<compile_context>
chip_gen: v7x
topology: tpu7x:2x2x1
jax: 0.10.0
libtpu: 0.0.40
codegen_flags: <defaults>
</compile_context>

<pallas_src>
import functools

import jax
import jax.numpy as jnp
from jax.experimental import pallas as pl
from jax.experimental.pallas import tpu as pltpu

STATE_DIM = 16
ACTION_DIM = 8
H1 = 400   # TODO(synk): hidden sizes 400/300 pad to 512/384 lanes; rounding them
H2 = 300   #             to multiples of 128 would remove ~25% wasted MXU/lane work.


def _round_up(x, m):
    return ((x + m - 1) // m) * m


def _actor_kernel(x_ref, w1_ref, b1_ref, w2_ref, b2_ref, w3_ref, b3_ref, o_ref,
                  *, double):
    x = x_ref[...]
    # fc1 + ReLU  (bf16 weights upcast; f32 accumulate on the MXU)
    h1 = jnp.dot(x, w1_ref[...].astype(jnp.float32),
                 preferred_element_type=jnp.float32) + b1_ref[...]
    h1 = jnp.maximum(h1, 0.0)
    # fc2 + ReLU
    h2 = jnp.dot(h1, w2_ref[...].astype(jnp.float32),
                 preferred_element_type=jnp.float32) + b2_ref[...]
    h2 = jnp.maximum(h2, 0.0)
    # fc3 + tanh
    h3 = jnp.dot(h2, w3_ref[...].astype(jnp.float32),
                 preferred_element_type=jnp.float32) + b3_ref[...]
    y = jnp.tanh(h3)
    if not double:
        y = 3.0 * y
    o_ref[...] = y.astype(o_ref.dtype)


def actor_forward(state, params, *, double=False, block_b=128):
    """state: [B, state_dim] float32 -> [B, action_dim] float32."""
    w1, b1, w2, b2, w3, b3 = params
    B = state.shape[0]

    # Batch tile: full sublanes (multiple of 8), capped at block_b.
    TB = min(block_b, _round_up(B, 8))
    Bp = _round_up(B, TB)
    if Bp != B:
        state = jnp.pad(state, ((0, Bp - B), (0, 0)))
    grid = (Bp // TB,)

    # Weights/biases: full-array blocks pinned to block (0, 0) on every grid
    # step -> DMA'd once, VMEM-resident across the whole batch sweep.
    pinned = lambda arr: pl.BlockSpec(arr.shape, lambda i: (0, 0))

    weight_bytes = sum(int(a.size) * a.dtype.itemsize
                       for a in (w1, b1, w2, b2, w3, b3))
    cost = pl.CostEstimate(
        flops=2 * Bp * (STATE_DIM * H1 + H1 * H2 + H2 * ACTION_DIM),
        transcendentals=Bp * ACTION_DIM,
        bytes_accessed=weight_bytes + Bp * STATE_DIM * 4 + Bp * ACTION_DIM * 4,
    )

    out = pl.pallas_call(
        functools.partial(_actor_kernel, double=double),
        out_shape=jax.ShapeDtypeStruct((Bp, ACTION_DIM), jnp.float32),
        grid=grid,
        in_specs=[
            pl.BlockSpec((TB, STATE_DIM), lambda i: (i, 0)),
            pinned(w1), pinned(b1),
            pinned(w2), pinned(b2),
            pinned(w3), pinned(b3),
        ],
        out_specs=pl.BlockSpec((TB, ACTION_DIM), lambda i: (i, 0)),
        compiler_params=pltpu.CompilerParams(
            dimension_semantics=("parallel",)),
        cost_estimate=cost,
    )(state, w1, b1, w2, b2, w3, b3)
    return out[:B]


def init_actor_params(key, state_dim=STATE_DIM, action_dim=ACTION_DIM):
    """Deterministic init mimicking nn.Linear defaults (+ fc3 uniform(-0.003, 0.003)).

    Weights are stored as [in_features, out_features] in bfloat16 (halves HBM
    traffic; the kernel accumulates in f32). Biases stay float32.
    """
    k1, k2, k3, k4, k5, k6 = jax.random.split(key, 6)

    def linear_init(kw, kb, fan_in, fan_out):
        bound = 1.0 / jnp.sqrt(fan_in)
        w = jax.random.uniform(kw, (fan_in, fan_out), jnp.float32, -bound, bound)
        b = jax.random.uniform(kb, (1, fan_out), jnp.float32, -bound, bound)
        return w.astype(jnp.bfloat16), b

    w1, b1 = linear_init(k1, k2, state_dim, H1)
    w2, b2 = linear_init(k3, k4, H1, H2)
    # fc3: uniform(-0.003, 0.003) for both weight and bias (as in the module)
    w3 = jax.random.uniform(k5, (H2, action_dim), jnp.float32, -0.003, 0.003)
    w3 = w3.astype(jnp.bfloat16)
    b3 = jax.random.uniform(k6, (1, action_dim), jnp.float32, -0.003, 0.003)
    return (w1, b1, w2, b2, w3, b3)


def actor_reference(state, params, *, double=False):
    """Plain-JAX reference for correctness checking (same bf16-rounded weights)."""
    w1, b1, w2, b2, w3, b3 = params
    hp = jax.lax.Precision.HIGHEST
    w1, w2, w3 = (w.astype(jnp.float32) for w in (w1, w2, w3))
    h = jnp.maximum(jnp.dot(state, w1, precision=hp) + b1, 0.0)
    h = jnp.maximum(jnp.dot(h, w2, precision=hp) + b2, 0.0)
    y = jnp.tanh(jnp.dot(h, w3, precision=hp) + b3)
    return y if double else 3.0 * y


if __name__ == "__main__":
    key = jax.random.PRNGKey(0)
    kp, kx = jax.random.split(key)

    params = init_actor_params(kp)

    # Small serving-style batch.
    batch = 2
    state = jax.random.normal(kx, (batch, STATE_DIM), jnp.float32)
    out = jax.block_until_ready(actor_forward(state, params, double=False))
    ref = actor_reference(state, params, double=False)
    assert out.shape == (batch, ACTION_DIM)
    assert jnp.allclose(out, ref, atol=1e-3, rtol=1e-3), "Pallas output mismatch (B=2)"

    # Larger, non-multiple-of-block batch exercising the tiled grid + padding path.
    batch2 = 300
    state2 = jax.random.normal(jax.random.PRNGKey(1), (batch2, STATE_DIM), jnp.float32)
    out2 = jax.block_until_ready(actor_forward(state2, params, double=False))
    ref2 = actor_reference(state2, params, double=False)
    assert out2.shape == (batch2, ACTION_DIM)
    assert jnp.allclose(out2, ref2, atol=1e-3, rtol=1e-3), "Pallas output mismatch (B=300)"

    print("KERNEL_OK")
</pallas_src>

<mosaic_0001>
module attributes {stable_mosaic.version = 11 : i64} {
  func.func @_actor_kernel(%arg0: i32, %arg1: memref<8x16xf32, #tpu.memory_space<vmem>>, %arg2: memref<16x400xbf16, #tpu.memory_space<vmem>>, %arg3: memref<1x400xf32, #tpu.memory_space<vmem>>, %arg4: memref<400x300xbf16, #tpu.memory_space<vmem>>, %arg5: memref<1x300xf32, #tpu.memory_space<vmem>>, %arg6: memref<300x8xbf16, #tpu.memory_space<vmem>>, %arg7: memref<1x8xf32, #tpu.memory_space<vmem>>, %arg8: memref<8x8xf32, #tpu.memory_space<vmem>>) attributes {dimension_semantics = [#tpu.dimension_semantics<parallel>], iteration_bounds = array<i64: 1>, scalar_prefetch = 0 : i64, scratch_operands = 0 : i64, tpu.core_type = #tpu.core_type<tc>, window_params = [{transform_indices = @transform_0, window_bounds = array<i64: 8, 16>}, {pipeline_mode = #tpu.pipeline_mode<synchronous>, transform_indices = @transform_1, window_bounds = array<i64: 16, 400>}, {pipeline_mode = #tpu.pipeline_mode<synchronous>, transform_indices = @transform_2, window_bounds = array<i64: 1, 400>}, {pipeline_mode = #tpu.pipeline_mode<synchronous>, transform_indices = @transform_3, window_bounds = array<i64: 400, 300>}, {pipeline_mode = #tpu.pipeline_mode<synchronous>, transform_indices = @transform_4, window_bounds = array<i64: 1, 300>}, {pipeline_mode = #tpu.pipeline_mode<synchronous>, transform_indices = @transform_5, window_bounds = array<i64: 300, 8>}, {pipeline_mode = #tpu.pipeline_mode<synchronous>, transform_indices = @transform_6, window_bounds = array<i64: 1, 8>}, {transform_indices = @transform_7, window_bounds = array<i64: 8, 8>}]} {
    %c0 = arith.constant 0 : index
    %c0_0 = arith.constant 0 : index
    %0 = vector.load %arg1[%c0, %c0_0] : memref<8x16xf32, #tpu.memory_space<vmem>>, vector<8x16xf32>
    %c0_1 = arith.constant 0 : index
    %c0_2 = arith.constant 0 : index
    %1 = vector.load %arg2[%c0_1, %c0_2] : memref<16x400xbf16, #tpu.memory_space<vmem>>, vector<16x400xbf16>
    %2 = arith.extf %1 : vector<16x400xbf16> to vector<16x400xf32>
    %cst = arith.constant dense<0.000000e+00> : vector<8x400xf32>
    %3 = tpu.matmul %0, %2, %cst {dimension_numbers = #tpu.dot_dimension_numbers<[1], [0], [0], [1], [0, 0, 1, 1], [], []>} : vector<8x16xf32>, vector<16x400xf32>, vector<8x400xf32> -> vector<8x400xf32>
    %c0_3 = arith.constant 0 : index
    %c0_4 = arith.constant 0 : index
    %4 = vector.load %arg3[%c0_3, %c0_4] : memref<1x400xf32, #tpu.memory_space<vmem>>, vector<1x400xf32>
    %5 = vector.broadcast %4 : vector<1x400xf32> to vector<8x400xf32>
    %6 = arith.addf %3, %5 : vector<8x400xf32>
    %cst_5 = arith.constant 0.000000e+00 : f32
    %7 = vector.broadcast %cst_5 : f32 to vector<8x400xf32>
    %8 = arith.maximumf %6, %7 : vector<8x400xf32>
    %c0_6 = arith.constant 0 : index
    %c0_7 = arith.constant 0 : index
    %9 = vector.load %arg4[%c0_6, %c0_7] : memref<400x300xbf16, #tpu.memory_space<vmem>>, vector<400x300xbf16>
    %10 = arith.extf %9 : vector<400x300xbf16> to vector<400x300xf32>
    %cst_8 = arith.constant dense<0.000000e+00> : vector<8x300xf32>
    %11 = tpu.matmul %8, %10, %cst_8 {dimension_numbers = #tpu.dot_dimension_numbers<[1], [0], [0], [1], [0, 0, 1, 1], [], []>} : vector<8x400xf32>, vector<400x300xf32>, vector<8x300xf32> -> vector<8x300xf32>
    %c0_9 = arith.constant 0 : index
    %c0_10 = arith.constant 0 : index
    %12 = vector.load %arg5[%c0_9, %c0_10] : memref<1x300xf32, #tpu.memory_space<vmem>>, vector<1x300xf32>
    %13 = vector.broadcast %12 : vector<1x300xf32> to vector<8x300xf32>
    %14 = arith.addf %11, %13 : vector<8x300xf32>
    %cst_11 = arith.constant 0.000000e+00 : f32
    %15 = vector.broadcast %cst_11 : f32 to vector<8x300xf32>
    %16 = arith.maximumf %14, %15 : vector<8x300xf32>
    %c0_12 = arith.constant 0 : index
    %c0_13 = arith.constant 0 : index
    %17 = vector.load %arg6[%c0_12, %c0_13] : memref<300x8xbf16, #tpu.memory_space<vmem>>, vector<300x8xbf16>
    %18 = arith.extf %17 : vector<300x8xbf16> to vector<300x8xf32>
    %cst_14 = arith.constant dense<0.000000e+00> : vector<8x8xf32>
    %19 = tpu.matmul %16, %18, %cst_14 {dimension_numbers = #tpu.dot_dimension_numbers<[1], [0], [0], [1], [0, 0, 1, 1], [], []>} : vector<8x300xf32>, vector<300x8xf32>, vector<8x8xf32> -> vector<8x8xf32>
    %c0_15 = arith.constant 0 : index
    %c0_16 = arith.constant 0 : index
    %20 = vector.load %arg7[%c0_15, %c0_16] : memref<1x8xf32, #tpu.memory_space<vmem>>, vector<1x8xf32>
    %21 = vector.broadcast %20 : vector<1x8xf32> to vector<8x8xf32>
    %22 = arith.addf %19, %21 : vector<8x8xf32>
    %23 = math.tanh %22 : vector<8x8xf32>
    %cst_17 = arith.constant 3.000000e+00 : f32
    %24 = vector.broadcast %cst_17 : f32 to vector<8x8xf32>
    %25 = arith.mulf %24, %23 : vector<8x8xf32>
    %c0_18 = arith.constant 0 : index
    %c0_19 = arith.constant 0 : index
    %26 = vector.load %arg8[%c0_18, %c0_19] : memref<8x8xf32, #tpu.memory_space<vmem>>, vector<8x8xf32>
    tpu.vector_store %arg8[%c0_18, %c0_19], %25 {strides = array<i32>} : memref<8x8xf32, #tpu.memory_space<vmem>>, vector<8x8xf32>,
    return
  }
  func.func @transform_0(%arg0: i32) -> (i32, i32) {
    %c0_i32 = arith.constant 0 : i32
    %c0_i32_0 = arith.constant 0 : i32
    return %arg0, %c0_i32 : i32, i32
  }
  func.func @transform_1(%arg0: i32) -> (i32, i32) {
    %c0_i32 = arith.constant 0 : i32
    %c0_i32_0 = arith.constant 0 : i32
    %c0_i32_1 = arith.constant 0 : i32
    return %c0_i32, %c0_i32_0 : i32, i32
  }
  func.func @transform_2(%arg0: i32) -> (i32, i32) {
    %c0_i32 = arith.constant 0 : i32
    %c0_i32_0 = arith.constant 0 : i32
    %c0_i32_1 = arith.constant 0 : i32
    return %c0_i32, %c0_i32_0 : i32, i32
  }
  func.func @transform_3(%arg0: i32) -> (i32, i32) {
    %c0_i32 = arith.constant 0 : i32
    %c0_i32_0 = arith.constant 0 : i32
    %c0_i32_1 = arith.constant 0 : i32
    return %c0_i32, %c0_i32_0 : i32, i32
  }
  func.func @transform_4(%arg0: i32) -> (i32, i32) {
    %c0_i32 = arith.constant 0 : i32
    %c0_i32_0 = arith.constant 0 : i32
    %c0_i32_1 = arith.constant 0 : i32
    return %c0_i32, %c0_i32_0 : i32, i32
  }
  func.func @transform_5(%arg0: i32) -> (i32, i32) {
    %c0_i32 = arith.constant 0 : i32
    %c0_i32_0 = arith.constant 0 : i32
    %c0_i32_1 = arith.constant 0 : i32
    return %c0_i32, %c0_i32_0 : i32, i32
  }
  func.func @transform_6(%arg0: i32) -> (i32, i32) {
    %c0_i32 = arith.constant 0 : i32
    %c0_i32_0 = arith.constant 0 : i32
    %c0_i32_1 = arith.constant 0 : i32
    return %c0_i32, %c0_i32_0 : i32, i32
  }
  func.func @transform_7(%arg0: i32) -> (i32, i32) {
    %c0_i32 = arith.constant 0 : i32
    %c0_i32_0 = arith.constant 0 : i32
    return %arg0, %c0_i32 : i32, i32
  }
}

</mosaic_0001>

<llo_original>
// kernel: tpu_custom_call.1
$region0: #{tpu_custom_call.1}
  #allocation0 [shape = 'u32[]', space=smem, size = 0x4, offset = 0x4, fixed_abs, tag = 'smem constant byte address 0x4 - core index']
  #allocation1 [shape = 'u32[144,128]{1,0:T(1,128)}', space=vmem, size = 0x12000, scoped, tag = 'internal scratch']
  %s0 = inlined_call_operand.vmem [shape: f32[8,16], index: 0, kind: input, shape index: {}]
  %s1 = inlined_call_operand.vmem [shape: bf16[16,400], index: 1, kind: input, shape index: {}]
  %s2 = inlined_call_operand.vmem [shape: f32[1,400], index: 2, kind: input, shape index: {}]
  %s3 = inlined_call_operand.hbm [shape: bf16[400,300], index: 3, kind: input, shape index: {}]
  %s4 = inlined_call_operand.vmem [shape: f32[1,300], index: 4, kind: input, shape index: {}]
  %s5 = inlined_call_operand.vmem [shape: bf16[300,8], index: 5, kind: input, shape index: {}]
  %s6 = inlined_call_operand.vmem [shape: f32[1,8], index: 6, kind: input, shape index: {}]
  %s7 = inlined_call_operand.hbm [shape: f32[8,8], index: 7, kind: output, shape index: {}]
  %s8 = sld [smem:[#allocation0]]
  $region42: #{tpu_custom_call.1} parent=0
    _
  %s10 = ssub.s32 1, %s8
  %s11 = scalar_select 0, %s10, %s8
  $region1: #{tpu_custom_call.1} parent=0
    #allocation2 [shape = 'u8[307200]{0}', space=vmem, size = 0x4b000, scoped, tag = 'input window, operand 3, single buffered']
    #allocation3 [shape = 's32[1]{0}', space=sflag, size = 0x4, scoped, tag = 'scoped memory for tpu_custom_call.1']
    #allocation4 [shape = 's32[1]{0}', space=sflag, size = 0x4, scoped, tag = 'scoped memory for tpu_custom_call.1']
    #allocation5 [shape = 'u8[4096]{0}', space=vmem, size = 0x1000, scoped, tag = 'output window, operand 0, single buffered']
    %12 = vsyncpa [#allocation3], 0
    %13 = vsyncpa [#allocation4], 0
    // Predicated region
    $region2: #{tpu_custom_call.1} parent=1 // pred_check
      _
    $region3: #{tpu_custom_call.1} parent=1 // pred_check_branch
      %15 = sbr.rel (0) target = $region5
    $region4: #{tpu_custom_call.1} parent=1 // pred_region
      _
    $region5: #{tpu_custom_call.1} parent=1 // pred_fallthru
      _
    // Predicated region
    $region6: #{tpu_custom_call.1} parent=1 // pred_check
      _
    $region7: #{tpu_custom_call.1} parent=1 // pred_check_branch
      %17 = sbr.rel (0) target = $region9
    $region8: #{tpu_custom_call.1} parent=1 // pred_region
      _
    $region9: #{tpu_custom_call.1} parent=1 // pred_fallthru
      _
    // Predicated region
    $region10: #{tpu_custom_call.1} parent=1 // pred_check
      _
    $region11: #{tpu_custom_call.1} parent=1 // pred_check_branch
      %19 = sbr.rel (0) target = $region13
    $region12: #{tpu_custom_call.1} parent=1 // pred_region
      _
    $region13: #{tpu_custom_call.1} parent=1 // pred_fallthru
      _
    // Predicated region
    $region14: #{tpu_custom_call.1} parent=1 // pred_check
      _
    $region15: #{tpu_custom_call.1} parent=1 // pred_check_branch
      %21 = sbr.rel (0) target = $region17
    $region16: #{tpu_custom_call.1} parent=1 // pred_region
      %s23 = ssub.s32 9600, 9600
      %24 = vsyncadd [#allocation3], %s23
      %s25 = sshll.u32 [#allocation2], 4
      %s26 = int_to_ptr.vmem [resolvable:$true] %s25
      %31 = dma.hbm_to_vmem [thread:$0]  %s3, 9600, %s26, [#allocation3], 192, 192, 12
    $region17: #{tpu_custom_call.1} parent=1 // pred_fallthru
      _
    // Predicated region
    $region18: #{tpu_custom_call.1} parent=1 // pred_check
      _
    $region19: #{tpu_custom_call.1} parent=1 // pred_check_branch
      %33 = sbr.rel (0) target = $region21
    $region20: #{tpu_custom_call.1} parent=1 // pred_region
      _
    $region21: #{tpu_custom_call.1} parent=1 // pred_fallthru
      _
    // Predicated region
    $region22: #{tpu_custom_call.1} parent=1 // pred_check
      _
    $region23: #{tpu_custom_call.1} parent=1 // pred_check_branch
      %35 = sbr.rel (0) target = $region25
    $region24: #{tpu_custom_call.1} parent=1 // pred_region
      _
    $region25: #{tpu_custom_call.1} parent=1 // pred_fallthru
      _
    // Predicated region
    $region26: #{tpu_custom_call.1} parent=1 // pred_check
      _
    $region27: #{tpu_custom_call.1} parent=1 // pred_check_branch
      %37 = sbr.rel (0) target = $region29
    $region28: #{tpu_custom_call.1} parent=1 // pred_region
      _
    $region29: #{tpu_custom_call.1} parent=1 // pred_fallthru
      _
    // Predicated region
    $region30: #{tpu_custom_call.1} parent=1 // pred_check
      _
    $region31: #{tpu_custom_call.1} parent=1 // pred_check_branch
      %39 = sbr.rel (0) target = $region33
    $region32: #{tpu_custom_call.1} parent=1 // pred_region
      %40 = dma.done [#allocation3], 9600
    $region33: #{tpu_custom_call.1} parent=1 // pred_fallthru
      _
    %v41 = vld [vmem:[%s0] sm:$0xff]
    %v42 = vld [vmem:[%s1] sm:$0xff]
    %v43 = vld [vmem:[%s1 + $0x8] sm:$0xff]
    %v44 = vld [vmem:[%s1 + $0x10] sm:$0xff]
    %v45 = vld [vmem:[%s1 + $0x18] sm:$0xff]
    %v46 = vunpack.c.l.bf16 %v42
    %v47 = vunpack.c.h.bf16 %v42
    %v48 = vunpack.c.l.bf16 %v43
    %v49 = vunpack.c.h.bf16 %v43
    %v50 = vunpack.c.l.bf16 %v44
    %v51 = vunpack.c.h.bf16 %v44
    %v52 = vunpack.c.l.bf16 %v45
    %v53 = vunpack.c.h.bf16 %v45
    %v54 = vld [vmem:[%s2] sm:$0xf]
    %v56 = vlaneseq
    %v57 = vshrl.u32 %v56, 7
    %v58 = vsub.s32 0, %v57
    %v59 = vrot.slane %v54, %v58
    %v60 = vlaneseq
    %v61 = vshrl.u32 %v60, 7
    %v62 = vsub.s32 1, %v61
    %v63 = vrot.slane %v54, %v62
    %v64 = vlaneseq
    %v65 = vshrl.u32 %v64, 7
    %v66 = vsub.s32 2, %v65
    %v67 = vrot.slane %v54, %v66
    %v68 = vlaneseq
    %v69 = vshrl.u32 %v68, 7
    %v70 = vsub.s32 3, %v69
    %v71 = vrot.slane %v54, %v70
    %vm76 = vcmask 130048
    %v78 = vsel %vm76, %v41, 0
    %80 = vmatprep.subr.mxu0 %v47
    %81 = vmatpush1.msra.mxu0 %v46
    %82 = vmatprep.subr.mxu0 %v51
    %83 = vmatpush1.msra.mxu0 %v50
    %84 = vmatprep.subr.mxu0 0.0
    %85 = vmatpush1.msra.mxu0 0.0
    %86 = vmatprep.subr.mxu0 0.0
    %87 = vmatpush1.msra.mxu0 0.0
    %88 = vmatprep.subr.mxu0 0.0
    %89 = vmatpush1.msra.mxu0 0.0
    %90 = vmatprep.subr.mxu0 0.0
    %91 = vmatpush1.msra.mxu0 0.0
    %92 = vmatprep.subr.mxu0 0.0
    %93 = vmatpush1.msra.mxu0 0.0
    %94 = vmatprep.subr.mxu0 0.0
    %95 = vmatpush1.msra.mxu0 0.0
    %96 = vmatprep.subr.mxu0 0.0
    %97 = vmatpush1.msra.mxu0 0.0
    %98 = vmatprep.subr.mxu0 0.0
    %99 = vmatpush1.msra.mxu0 0.0
    %100 = vmatprep.subr.mxu0 0.0
    %101 = vmatpush1.msra.mxu0 0.0
    %102 = vmatprep.subr.mxu0 0.0
    %103 = vmatpush1.msra.mxu0 0.0
    %104 = vmatprep.subr.mxu0 0.0
    %105 = vmatpush1.msra.mxu0 0.0
    %106 = vmatprep.subr.mxu0 0.0
    %107 = vmatpush1.msra.mxu0 0.0
    %108 = vmatprep.subr.mxu0 0.0
    %109 = vmatpush1.msra.mxu0 0.0
    %110 = vmatprep.subr.mxu0 0.0
    %111 = vmatpush1.msra.mxu0 0.0
    %112 = vmatprep.subr.mxu0 0.0
    %113 = vmatpush1.msra.mxu0 0.0
    %114 = vmatprep.subr.mxu0 0.0
    %115 = vmatpush1.msra.mxu0 0.0
    %116 = vmatprep.subr.mxu0 0.0
    %117 = vmatpush1.msra.mxu0 0.0
    %118 = vmatprep.subr.mxu0 0.0
    %119 = vmatpush1.msra.mxu0 0.0
    %120 = vmatprep.subr.mxu0 0.0
    %121 = vmatpush1.msra.mxu0 0.0
    %122 = vmatprep.subr.mxu0 0.0
    %123 = vmatpush1.msra.mxu0 0.0
    %124 = vmatprep.subr.mxu0 0.0
    %125 = vmatpush1.msra.mxu0 0.0
    %126 = vmatprep.subr.mxu0 0.0
    %127 = vmatpush1.msra.mxu0 0.0
    %128 = vmatprep.subr.mxu0 0.0
    %129 = vmatpush1.msra.mxu0 0.0
    %130 = vmatprep.subr.mxu0 0.0
    %131 = vmatpush1.msra.mxu0 0.0
    %132 = vmatprep.subr.mxu0 0.0
    %133 = vmatpush1.msra.mxu0 0.0
    %134 = vmatprep.subr.mxu0 0.0
    %135 = vmatpush1.msra.mxu0 0.0
    %136 = vmatprep.subr.mxu0 0.0
    %137 = vmatpush1.msra.mxu0 0.0
    %138 = vmatprep.subr.mxu0 0.0
    %139 = vmatpush1.msra.mxu0 0.0
    %140 = vmatprep.subr.mxu0 0.0
    %141 = vmatpush1.msra.mxu0 0.0
    %142 = vmatprep.subr.mxu0 0.0
    %143 = vmatpush1.msra.mxu0 0.0
    %144 = vmatprep.mubr.f32.mxu0 0.0
    %145 = vmatmul.mubr.f32.gmra.mrb[0].mxu0 %v78
    %v146 = vpop.f32.mrb[0].mxu0
    %v147 = vadd.f32 %v59, %v146
    %v148 = vpop.f32.mrb[0].mxu0
    %v149 = vadd.f32 %v63, %v148
    %150 = vdwg.mxu0
    %151 = vmatprep.subr.mxu0 %v49
    %152 = vmatpush1.msra.mxu0 %v48
    %153 = vmatprep.subr.mxu0 %v53
    %154 = vmatpush1.msra.mxu0 %v52
    %155 = vmatprep.subr.mxu0 0.0
    %156 = vmatpush1.msra.mxu0 0.0
    %157 = vmatprep.subr.mxu0 0.0
    %158 = vmatpush1.msra.mxu0 0.0
    %159 = vmatprep.subr.mxu0 0.0
    %160 = vmatpush1.msra.mxu0 0.0
    %161 = vmatprep.subr.mxu0 0.0
    %162 = vmatpush1.msra.mxu0 0.0
    %163 = vmatprep.subr.mxu0 0.0
    %164 = vmatpush1.msra.mxu0 0.0
    %165 = vmatprep.subr.mxu0 0.0
    %166 = vmatpush1.msra.mxu0 0.0
    %167 = vmatprep.subr.mxu0 0.0
    %168 = vmatpush1.msra.mxu0 0.0
    %169 = vmatprep.subr.mxu0 0.0
    %170 = vmatpush1.msra.mxu0 0.0
    %171 = vmatprep.subr.mxu0 0.0
    %172 = vmatpush1.msra.mxu0 0.0
    %173 = vmatprep.subr.mxu0 0.0
    %174 = vmatpush1.msra.mxu0 0.0
    %175 = vmatprep.subr.mxu0 0.0
    %176 = vmatpush1.msra.mxu0 0.0
    %177 = vmatprep.subr.mxu0 0.0
    %178 = vmatpush1.msra.mxu0 0.0
    %179 = vmatprep.subr.mxu0 0.0
    %180 = vmatpush1.msra.mxu0 0.0
    %181 = vmatprep.subr.mxu0 0.0
    %182 = vmatpush1.msra.mxu0 0.0
    %183 = vmatprep.subr.mxu0 0.0
    %184 = vmatpush1.msra.mxu0 0.0
    %185 = vmatprep.subr.mxu0 0.0
    %186 = vmatpush1.msra.mxu0 0.0
    %187 = vmatprep.subr.mxu0 0.0
    %188 = vmatpush1.msra.mxu0 0.0
    %189 = vmatprep.subr.mxu0 0.0
    %190 = vmatpush1.msra.mxu0 0.0
    %191 = vmatprep.subr.mxu0 0.0
    %192 = vmatpush1.msra.mxu0 0.0
    %193 = vmatprep.subr.mxu0 0.0
    %194 = vmatpush1.msra.mxu0 0.0
    %195 = vmatprep.subr.mxu0 0.0
    %196 = vmatpush1.msra.mxu0 0.0
    %197 = vmatprep.subr.mxu0 0.0
    %198 = vmatpush1.msra.mxu0 0.0
    %199 = vmatprep.subr.mxu0 0.0
    %200 = vmatpush1.msra.mxu0 0.0
    %201 = vmatprep.subr.mxu0 0.0
    %202 = vmatpush1.msra.mxu0 0.0
    %203 = vmatprep.subr.mxu0 0.0
    %204 = vmatpush1.msra.mxu0 0.0
    %205 = vmatprep.subr.mxu0 0.0
    %206 = vmatpush1.msra.mxu0 0.0
    %207 = vmatprep.subr.mxu0 0.0
    %208 = vmatpush1.msra.mxu0 0.0
    %209 = vmatprep.subr.mxu0 0.0
    %210 = vmatpush1.msra.mxu0 0.0
    %211 = vmatprep.subr.mxu0 0.0
    %212 = vmatpush1.msra.mxu0 0.0
    %213 = vmatprep.subr.mxu0 0.0
    %214 = vmatpush1.msra.mxu0 0.0
    %215 = vmatprep.mubr.f32.mxu0 0.0
    %216 = vmatmul.mubr.f32.gmra.mrb[0].mxu0 %v78
    %v217 = vpop.f32.mrb[0].mxu0
    %v218 = vadd.f32 %v67, %v217
    %v219 = vpop.f32.mrb[0].mxu0
    %v220 = vadd.f32 %v71, %v219
    %221 = vdwg.mxu0
    %v222 = vmax.f32 %v147, 0.0
    %v223 = vmax.f32 %v149, 0.0
    %v224 = vmax.f32 %v218, 0.0
    %v225 = vmax.f32 %v220, 0.0
    %v226 = vld [vmem:[#allocation2] sm:$0xff]
    %v227 = vld [vmem:[#allocation2 + $0x8] sm:$0xf]
    %v228 = vld [vmem:[#allocation2 + $0xc] sm:$0xff]
    %v229 = vld [vmem:[#allocation2 + $0x14] sm:$0xf]
    %v230 = vld [vmem:[#allocation2 + $0x18] sm:$0xff]
    %v231 = vld [vmem:[#allocation2 + $0x20] sm:$0xf]
    %v232 = vld [vmem:[#allocation2 + $0x24] sm:$0xff]
    %v233 = vld [vmem:[#allocation2 + $0x2c] sm:$0xf]
    %v234 = vld [vmem:[#allocation2 + $0x30] sm:$0xff]
    %v235 = vld [vmem:[#allocation2 + $0x38] sm:$0xf]
    %v236 = vld [vmem:[#allocation2 + $0x3c] sm:$0xff]
    %v237 = vld [vmem:[#allocation2 + $0x44] sm:$0xf]
    %v238 = vld [vmem:[#allocation2 + $0x48] sm:$0xff]
    %v239 = vld [vmem:[#allocation2 + $0x50] sm:$0xf]
    %v240 = vld [vmem:[#allocation2 + $0x54] sm:$0xff]
    %v241 = vld [vmem:[#allocation2 + $0x5c] sm:$0xf]
    %v242 = vld [vmem:[#allocation2 + $0x60] sm:$0xff]
    %v243 = vld [vmem:[#allocation2 + $0x68] sm:$0xf]
    %v244 = vld [vmem:[#allocation2 + $0x6c] sm:$0xff]
    %v245 = vld [vmem:[#allocation2 + $0x74] sm:$0xf]
    %v246 = vld [vmem:[#allocation2 + $0x78] sm:$0xff]
    %v247 = vld [vmem:[#allocation2 + $0x80] sm:$0xf]
    %v248 = vld [vmem:[#allocation2 + $0x84] sm:$0xff]
    %v249 = vld [vmem:[#allocation2 + $0x8c] sm:$0xf]
    %v250 = vld [vmem:[#allocation2 + $0x90] sm:$0xff]
    %v251 = vld [vmem:[#allocation2 + $0x98] sm:$0xf]
    %v252 = vld [vmem:[#allocation2 + $0x9c] sm:$0xff]
    %v253 = vld [vmem:[#allocation2 + $0xa4] sm:$0xf]
    %v254 = vld [vmem:[#allocation2 + $0xa8] sm:$0xff]
    %v255 = vld [vmem:[#allocation2 + $0xb0] sm:$0xf]
    %v256 = vld [vmem:[#allocation2 + $0xb4] sm:$0xff]
    %v257 = vld [vmem:[#allocation2 + $0xbc] sm:$0xf]
    %v258 = vld [vmem:[#allocation2 + $0xc0] sm:$0xff]
    %v259 = vld [vmem:[#allocation2 + $0xc8] sm:$0xf]
    %v260 = vld [vmem:[#allocation2 + $0xcc] sm:$0xff]
    %v261 = vld [vmem:[#allocation2 + $0xd4] sm:$0xf]
    %v262 = vld [vmem:[#allocation2 + $0xd8] sm:$0xff]
    %v263 = vld [vmem:[#allocation2 + $0xe0] sm:$0xf]
    %v264 = vld [vmem:[#allocation2 + $0xe4] sm:$0xff]
    %v265 = vld [vmem:[#allocation2 + $0xec] sm:$0xf]
    %v266 = vld [vmem:[#allocation2 + $0xf0] sm:$0xff]
    %v267 = vld [vmem:[#allocation2 + $0xf8] sm:$0xf]
    %v268 = vld [vmem:[#allocation2 + $0xfc] sm:$0xff]
    %v269 = vld [vmem:[#allocation2 + $0x104] sm:$0xf]
    %v270 = vld [vmem:[#allocation2 + $0x108] sm:$0xff]
    %v271 = vld [vmem:[#allocation2 + $0x110] sm:$0xf]
    %v272 = vld [vmem:[#allocation2 + $0x114] sm:$0xff]
    %v273 = vld [vmem:[#allocation2 + $0x11c] sm:$0xf]
    %v274 = vld [vmem:[#allocation2 + $0x120] sm:$0xff]
    %v275 = vld [vmem:[#allocation2 + $0x128] sm:$0xf]
    %v276 = vld [vmem:[#allocation2 + $0x12c] sm:$0xff]
    %v277 = vld [vmem:[#allocation2 + $0x134] sm:$0xf]
    %v278 = vld [vmem:[#allocation2 + $0x138] sm:$0xff]
    %v279 = vld [vmem:[#allocation2 + $0x140] sm:$0xf]
    %v280 = vld [vmem:[#allocation2 + $0x144] sm:$0xff]
    %v281 = vld [vmem:[#allocation2 + $0x14c] sm:$0xf]
    %v282 = vld [vmem:[#allocation2 + $0x150] sm:$0xff]
    %v283 = vld [vmem:[#allocation2 + $0x158] sm:$0xf]
    %v284 = vld [vmem:[#allocation2 + $0x15c] sm:$0xff]
    %v285 = vld [vmem:[#allocation2 + $0x164] sm:$0xf]
    %v286 = vld [vmem:[#allocation2 + $0x168] sm:$0xff]
    %v287 = vld [vmem:[#allocation2 + $0x170] sm:$0xf]
    %v288 = vld [vmem:[#allocation2 + $0x174] sm:$0xff]
    %v289 = vld [vmem:[#allocation2 + $0x17c] sm:$0xf]
    %v290 = vld [vmem:[#allocation2 + $0x180] sm:$0xff]
    %v291 = vld [vmem:[#allocation2 + $0x188] sm:$0xf]
    %v292 = vld [vmem:[#allocation2 + $0x18c] sm:$0xff]
    %v293 = vld [vmem:[#allocation2 + $0x194] sm:$0xf]
    %v294 = vld [vmem:[#allocation2 + $0x198] sm:$0xff]
    %v295 = vld [vmem:[#allocation2 + $0x1a0] sm:$0xf]
    %v296 = vld [vmem:[#allocation2 + $0x1a4] sm:$0xff]
    %v297 = vld [vmem:[#allocation2 + $0x1ac] sm:$0xf]
    %v298 = vld [vmem:[#allocation2 + $0x1b0] sm:$0xff]
    %v299 = vld [vmem:[#allocation2 + $0x1b8] sm:$0xf]
    %v300 = vld [vmem:[#allocation2 + $0x1bc] sm:$0xff]
    %v301 = vld [vmem:[#allocation2 + $0x1c4] sm:$0xf]
    %v302 = vld [vmem:[#allocation2 + $0x1c8] sm:$0xff]
    %v303 = vld [vmem:[#allocation2 + $0x1d0] sm:$0xf]
    %v304 = vld [vmem:[#allocation2 + $0x1d4] sm:$0xff]
    %v305 = vld [vmem:[#allocation2 + $0x1dc] sm:$0xf]
    %v306 = vld [vmem:[#allocation2 + $0x1e0] sm:$0xff]
    %v307 = vld [vmem:[#allocation2 + $0x1e8] sm:$0xf]
    %v308 = vld [vmem:[#allocation2 + $0x1ec] sm:$0xff]
    %v309 = vld [vmem:[#allocation2 + $0x1f4] sm:$0xf]
    %v310 = vld [vmem:[#allocation2 + $0x1f8] sm:$0xff]
    %v311 = vld [vmem:[#allocation2 + $0x200] sm:$0xf]
    %v312 = vld [vmem:[#allocation2 + $0x204] sm:$0xff]
    %v313 = vld [vmem:[#allocation2 + $0x20c] sm:$0xf]
    %v314 = vld [vmem:[#allocation2 + $0x210] sm:$0xff]
    %v315 = vld [vmem:[#allocation2 + $0x218] sm:$0xf]
    %v316 = vld [vmem:[#allocation2 + $0x21c] sm:$0xff]
    %v317 = vld [vmem:[#allocation2 + $0x224] sm:$0xf]
    %v318 = vld [vmem:[#allocation2 + $0x228] sm:$0xff]
    %v319 = vld [vmem:[#allocation2 + $0x230] sm:$0xf]
    %v320 = vld [vmem:[#allocation2 + $0x234] sm:$0xff]
    %v321 = vld [vmem:[#allocation2 + $0x23c] sm:$0xf]
    %v322 = vld [vmem:[#allocation2 + $0x240] sm:$0xff]
    %v323 = vld [vmem:[#allocation2 + $0x248] sm:$0xf]
    %v324 = vld [vmem:[#allocation2 + $0x24c] sm:$0xff]
    %v325 = vld [vmem:[#allocation2 + $0x254] sm:$0xf]
    %v326 = vunpack.c.l.bf16 %v226
    %v327 = vunpack.c.h.bf16 %v226
    %v328 = vunpack.c.l.bf16 %v227
    %v329 = vunpack.c.l.bf16 %v228
    %v330 = vunpack.c.h.bf16 %v228
    %v331 = vunpack.c.l.bf16 %v229
    %v332 = vunpack.c.l.bf16 %v230
    %v333 = vunpack.c.h.bf16 %v230
    %v334 = vunpack.c.l.bf16 %v231
    %v335 = vunpack.c.l.bf16 %v232
    %v336 = vunpack.c.h.bf16 %v232
    %v337 = vunpack.c.l.bf16 %v233
    %v338 = vunpack.c.l.bf16 %v234
    %v339 = vunpack.c.h.bf16 %v234
    %v340 = vunpack.c.l.bf16 %v235
    %v341 = vunpack.c.l.bf16 %v236
    %v342 = vunpack.c.h.bf16 %v236
    %v343 = vunpack.c.l.bf16 %v237
    %v344 = vunpack.c.l.bf16 %v238
    %v345 = vunpack.c.h.bf16 %v238
    %v346 = vunpack.c.l.bf16 %v239
    %v347 = vunpack.c.l.bf16 %v240
    %v348 = vunpack.c.h.bf16 %v240
    %v349 = vunpack.c.l.bf16 %v241
    %v350 = vunpack.c.l.bf16 %v242
    %v351 = vunpack.c.h.bf16 %v242
    %v352 = vunpack.c.l.bf16 %v243
    %v353 = vunpack.c.l.bf16 %v244
    %v354 = vunpack.c.h.bf16 %v244
    %v355 = vunpack.c.l.bf16 %v245
    %v356 = vunpack.c.l.bf16 %v246
    %v357 = vunpack.c.h.bf16 %v246
    %v358 = vunpack.c.l.bf16 %v247
    %v359 = vunpack.c.l.bf16 %v248
    %v360 = vunpack.c.h.bf16 %v248
    %v361 = vunpack.c.l.bf16 %v249
    %v362 = vunpack.c.l.bf16 %v250
    %v363 = vunpack.c.h.bf16 %v250
    %v364 = vunpack.c.l.bf16 %v251
    %v365 = vunpack.c.l.bf16 %v252
    %v366 = vunpack.c.h.bf16 %v252
    %v367 = vunpack.c.l.bf16 %v253
    %v368 = vunpack.c.l.bf16 %v254
    %v369 = vunpack.c.h.bf16 %v254
    %v370 = vunpack.c.l.bf16 %v255
    %v371 = vunpack.c.l.bf16 %v256
    %v372 = vunpack.c.h.bf16 %v256
    %v373 = vunpack.c.l.bf16 %v257
    %v374 = vunpack.c.l.bf16 %v258
    %v375 = vunpack.c.h.bf16 %v258
    %v376 = vunpack.c.l.bf16 %v259
    %v377 = vunpack.c.l.bf16 %v260
    %v378 = vunpack.c.h.bf16 %v260
    %v379 = vunpack.c.l.bf16 %v261
    %v380 = vunpack.c.l.bf16 %v262
    %v381 = vunpack.c.h.bf16 %v262
    %v382 = vunpack.c.l.bf16 %v263
    %v383 = vunpack.c.l.bf16 %v264
    %v384 = vunpack.c.h.bf16 %v264
    %v385 = vunpack.c.l.bf16 %v265
    %v386 = vunpack.c.l.bf16 %v266
    %v387 = vunpack.c.h.bf16 %v266
    %v388 = vunpack.c.l.bf16 %v267
    %v389 = vunpack.c.l.bf16 %v268
    %v390 = vunpack.c.h.bf16 %v268
    %v391 = vunpack.c.l.bf16 %v269
    %v392 = vunpack.c.l.bf16 %v270
    %v393 = vunpack.c.h.bf16 %v270
    %v394 = vunpack.c.l.bf16 %v271
    %v395 = vunpack.c.l.bf16 %v272
    %v396 = vunpack.c.h.bf16 %v272
    %v397 = vunpack.c.l.bf16 %v273
    %v398 = vunpack.c.l.bf16 %v274
    %v399 = vunpack.c.h.bf16 %v274
    %v400 = vunpack.c.l.bf16 %v275
    %v401 = vunpack.c.l.bf16 %v276
    %v402 = vunpack.c.h.bf16 %v276
    %v403 = vunpack.c.l.bf16 %v277
    %v404 = vunpack.c.l.bf16 %v278
    %v405 = vunpack.c.h.bf16 %v278
    %v406 = vunpack.c.l.bf16 %v279
    %v407 = vunpack.c.l.bf16 %v280
    %v408 = vunpack.c.h.bf16 %v280
    %v409 = vunpack.c.l.bf16 %v281
    %v410 = vunpack.c.l.bf16 %v282
    %v411 = vunpack.c.h.bf16 %v282
    %v412 = vunpack.c.l.bf16 %v283
    %v413 = vunpack.c.l.bf16 %v284
    %v414 = vunpack.c.h.bf16 %v284
    %v415 = vunpack.c.l.bf16 %v285
    %v416 = vunpack.c.l.bf16 %v286
    %v417 = vunpack.c.h.bf16 %v286
    %v418 = vunpack.c.l.bf16 %v287
    %v419 = vunpack.c.l.bf16 %v288
    %v420 = vunpack.c.h.bf16 %v288
    %v421 = vunpack.c.l.bf16 %v289
    %v422 = vunpack.c.l.bf16 %v290
    %v423 = vunpack.c.h.bf16 %v290
    %v424 = vunpack.c.l.bf16 %v291
    %v425 = vunpack.c.l.bf16 %v292
    %v426 = vunpack.c.h.bf16 %v292
    %v427 = vunpack.c.l.bf16 %v293
    %v428 = vunpack.c.l.bf16 %v294
    %v429 = vunpack.c.h.bf16 %v294
    %v430 = vunpack.c.l.bf16 %v295
    %v431 = vunpack.c.l.bf16 %v296
    %v432 = vunpack.c.h.bf16 %v296
    %v433 = vunpack.c.l.bf16 %v297
    %v434 = vunpack.c.l.bf16 %v298
    %v435 = vunpack.c.h.bf16 %v298
    %v436 = vunpack.c.l.bf16 %v299
    %v437 = vunpack.c.l.bf16 %v300
    %v438 = vunpack.c.h.bf16 %v300
    %v439 = vunpack.c.l.bf16 %v301
    %v440 = vunpack.c.l.bf16 %v302
    %v441 = vunpack.c.h.bf16 %v302
    %v442 = vunpack.c.l.bf16 %v303
    %v443 = vunpack.c.l.bf16 %v304
    %v444 = vunpack.c.h.bf16 %v304
    %v445 = vunpack.c.l.bf16 %v305
    %v446 = vunpack.c.l.bf16 %v306
    %v447 = vunpack.c.h.bf16 %v306
    %v448 = vunpack.c.l.bf16 %v307
    %v449 = vunpack.c.l.bf16 %v308
    %v450 = vunpack.c.h.bf16 %v308
    %v451 = vunpack.c.l.bf16 %v309
    %v452 = vunpack.c.l.bf16 %v310
    %v453 = vunpack.c.h.bf16 %v310
    %v454 = vunpack.c.l.bf16 %v311
    %v455 = vunpack.c.l.bf16 %v312
    %v456 = vunpack.c.h.bf16 %v312
    %v457 = vunpack.c.l.bf16 %v313
    %v458 = vunpack.c.l.bf16 %v314
    %v459 = vunpack.c.h.bf16 %v314
    %v460 = vunpack.c.l.bf16 %v315
    %v461 = vunpack.c.l.bf16 %v316
    %v462 = vunpack.c.h.bf16 %v316
    %v463 = vunpack.c.l.bf16 %v317
    %v464 = vunpack.c.l.bf16 %v318
    %v465 = vunpack.c.h.bf16 %v318
    %v466 = vunpack.c.l.bf16 %v319
    %v467 = vunpack.c.l.bf16 %v320
    %v468 = vunpack.c.h.bf16 %v320
    %v469 = vunpack.c.l.bf16 %v321
    %v470 = vunpack.c.l.bf16 %v322
    %v471 = vunpack.c.h.bf16 %v322
    %v472 = vunpack.c.l.bf16 %v323
    %v473 = vunpack.c.l.bf16 %v324
    %v474 = vunpack.c.h.bf16 %v324
    %v475 = vunpack.c.l.bf16 %v325
    %v476 = vld [vmem:[%s4] sm:$0x7]
    %v478 = vlaneseq
    %v479 = vshrl.u32 %v478, 7
    %v480 = vsub.s32 0, %v479
    %v481 = vrot.slane %v476, %v480
    %v482 = vlaneseq
    %v483 = vshrl.u32 %v482, 7
    %v484 = vsub.s32 1, %v483
    %v485 = vrot.slane %v476, %v484
    %v486 = vlaneseq
    %v487 = vshrl.u32 %v486, 7
    %v488 = vsub.s32 2, %v487
    %v489 = vrot.slane %v476, %v488
    %v494 = vsel %vm76, %v225, 0
    %496 = vmatprep.subr.mxu0 %v327
    %497 = vmatpush1.msra.mxu0 %v326
    %498 = vmatprep.subr.mxu0 %v330
    %499 = vmatpush1.msra.mxu0 %v329
    %500 = vmatprep.subr.mxu0 %v333
    %501 = vmatpush1.msra.mxu0 %v332
    %502 = vmatprep.subr.mxu0 %v336
    %503 = vmatpush1.msra.mxu0 %v335
    %504 = vmatprep.subr.mxu0 %v339
    %505 = vmatpush1.msra.mxu0 %v338
    %506 = vmatprep.subr.mxu0 %v342
    %507 = vmatpush1.msra.mxu0 %v341
    %508 = vmatprep.subr.mxu0 %v345
    %509 = vmatpush1.msra.mxu0 %v344
    %510 = vmatprep.subr.mxu0 %v348
    %511 = vmatpush1.msra.mxu0 %v347
    %512 = vmatprep.subr.mxu0 %v351
    %513 = vmatpush1.msra.mxu0 %v350
    %514 = vmatprep.subr.mxu0 %v354
    %515 = vmatpush1.msra.mxu0 %v353
    %516 = vmatprep.subr.mxu0 %v357
    %517 = vmatpush1.msra.mxu0 %v356
    %518 = vmatprep.subr.mxu0 %v360
    %519 = vmatpush1.msra.mxu0 %v359
    %520 = vmatprep.subr.mxu0 %v363
    %521 = vmatpush1.msra.mxu0 %v362
    %522 = vmatprep.subr.mxu0 %v366
    %523 = vmatpush1.msra.mxu0 %v365
    %524 = vmatprep.subr.mxu0 %v369
    %525 = vmatpush1.msra.mxu0 %v368
    %526 = vmatprep.subr.mxu0 %v372
    %527 = vmatpush1.msra.mxu0 %v371
    %528 = vmatprep.subr.mxu0 %v375
    %529 = vmatpush1.msra.mxu0 %v374
    %530 = vmatprep.subr.mxu0 %v378
    %531 = vmatpush1.msra.mxu0 %v377
    %532 = vmatprep.subr.mxu0 %v381
    %533 = vmatpush1.msra.mxu0 %v380
    %534 = vmatprep.subr.mxu0 %v384
    %535 = vmatpush1.msra.mxu0 %v383
    %536 = vmatprep.subr.mxu0 %v387
    %537 = vmatpush1.msra.mxu0 %v386
    %538 = vmatprep.subr.mxu0 %v390
    %539 = vmatpush1.msra.mxu0 %v389
    %540 = vmatprep.subr.mxu0 %v393
    %541 = vmatpush1.msra.mxu0 %v392
    %542 = vmatprep.subr.mxu0 %v396
    %543 = vmatpush1.msra.mxu0 %v395
    %544 = vmatprep.subr.mxu0 %v399
    %545 = vmatpush1.msra.mxu0 %v398
    %546 = vmatprep.subr.mxu0 %v402
    %547 = vmatpush1.msra.mxu0 %v401
    %548 = vmatprep.subr.mxu0 %v405
    %549 = vmatpush1.msra.mxu0 %v404
    %550 = vmatprep.subr.mxu0 %v408
    %551 = vmatpush1.msra.mxu0 %v407
    %552 = vmatprep.subr.mxu0 %v411
    %553 = vmatpush1.msra.mxu0 %v410
    %554 = vmatprep.subr.mxu0 %v414
    %555 = vmatpush1.msra.mxu0 %v413
    %556 = vmatprep.subr.mxu0 %v417
    %557 = vmatpush1.msra.mxu0 %v416
    %558 = vmatprep.subr.mxu0 %v420
    %559 = vmatpush1.msra.mxu0 %v419
    %560 = vmatprep.mubr.f32.mxu0 %v223
    %561 = vmatmul.mubr.f32.gmra.mrb[0].mxu0 %v222
    %v562 = vpop.f32.mrb[0].mxu0
    %v563 = vadd.f32 %v481, %v562
    %v564 = vpop.f32.mrb[0].mxu0
    %v565 = vadd.f32 %v485, %v564
    %566 = vdwg.mxu0
    %567 = vmatprep.subr.mxu0 %v423
    %568 = vmatpush1.msra.mxu0 %v422
    %569 = vmatprep.subr.mxu0 %v426
    %570 = vmatpush1.msra.mxu0 %v425
    %571 = vmatprep.subr.mxu0 %v429
    %572 = vmatpush1.msra.mxu0 %v428
    %573 = vmatprep.subr.mxu0 %v432
    %574 = vmatpush1.msra.mxu0 %v431
    %575 = vmatprep.subr.mxu0 %v435
    %576 = vmatpush1.msra.mxu0 %v434
    %577 = vmatprep.subr.mxu0 %v438
    %578 = vmatpush1.msra.mxu0 %v437
    %579 = vmatprep.subr.mxu0 %v441
    %580 = vmatpush1.msra.mxu0 %v440
    %581 = vmatprep.subr.mxu0 %v444
    %582 = vmatpush1.msra.mxu0 %v443
    %583 = vmatprep.subr.mxu0 %v447
    %584 = vmatpush1.msra.mxu0 %v446
    %585 = vmatprep.subr.mxu0 %v450
    %586 = vmatpush1.msra.mxu0 %v449
    %587 = vmatprep.subr.mxu0 %v453
    %588 = vmatpush1.msra.mxu0 %v452
    %589 = vmatprep.subr.mxu0 %v456
    %590 = vmatpush1.msra.mxu0 %v455
    %591 = vmatprep.subr.mxu0 %v459
    %592 = vmatpush1.msra.mxu0 %v458
    %593 = vmatprep.subr.mxu0 %v462
    %594 = vmatpush1.msra.mxu0 %v461
    %595 = vmatprep.subr.mxu0 %v465
    %596 = vmatpush1.msra.mxu0 %v464
    %597 = vmatprep.subr.mxu0 %v468
    %598 = vmatpush1.msra.mxu0 %v467
    %599 = vmatprep.subr.mxu0 %v471
    %600 = vmatpush1.msra.mxu0 %v470
    %601 = vmatprep.subr.mxu0 %v474
    %602 = vmatpush1.msra.mxu0 %v473
    %603 = vmatprep.subr.mxu0 0.0
    %604 = vmatpush1.msra.mxu0 0.0
    %605 = vmatprep.subr.mxu0 0.0
    %606 = vmatpush1.msra.mxu0 0.0
    %607 = vmatprep.subr.mxu0 0.0
    %608 = vmatpush1.msra.mxu0 0.0
    %609 = vmatprep.subr.mxu0 0.0
    %610 = vmatpush1.msra.mxu0 0.0
    %611 = vmatprep.subr.mxu0 0.0
    %612 = vmatpush1.msra.mxu0 0.0
    %613 = vmatprep.subr.mxu0 0.0
    %614 = vmatpush1.msra.mxu0 0.0
    %615 = vmatprep.subr.mxu0 0.0
    %616 = vmatpush1.msra.mxu0 0.0
    %617 = vmatprep.subr.mxu0 0.0
    %618 = vmatpush1.msra.mxu0 0.0
    %619 = vmatprep.subr.mxu0 0.0
    %620 = vmatpush1.msra.mxu0 0.0
    %621 = vmatprep.subr.mxu0 0.0
    %622 = vmatpush1.msra.mxu0 0.0
    %623 = vmatprep.subr.mxu0 0.0
    %624 = vmatpush1.msra.mxu0 0.0
    %625 = vmatprep.subr.mxu0 0.0
    %626 = vmatpush1.msra.mxu0 0.0
    %627 = vmatprep.subr.mxu0 0.0
    %628 = vmatpush1.msra.mxu0 0.0
    %629 = vmatprep.subr.mxu0 0.0
    %630 = vmatpush1.msra.mxu0 0.0
    %631 = vmatprep.mubr.f32.mxu0 %v494
    %632 = vmatmul.mubr.f32.gmra.mrb[0].mxu0 %v224
    %v633 = vpop.f32.mrb[0].mxu0
    %v634 = vadd.f32 %v563, %v633
    %v635 = vpop.f32.mrb[0].mxu0
    %v636 = vadd.f32 %v565, %v635
    %637 = vdwg.mxu0
    %638 = vmatprep.subr.mxu0 0.0
    %639 = vmatpush1.msra.mxu0 %v328
    %640 = vmatprep.subr.mxu0 0.0
    %641 = vmatpush1.msra.mxu0 %v331
    %642 = vmatprep.subr.mxu0 0.0
    %643 = vmatpush1.msra.mxu0 %v334
    %644 = vmatprep.subr.mxu0 0.0
    %645 = vmatpush1.msra.mxu0 %v337
    %646 = vmatprep.subr.mxu0 0.0
    %647 = vmatpush1.msra.mxu0 %v340
    %648 = vmatprep.subr.mxu0 0.0
    %649 = vmatpush1.msra.mxu0 %v343
    %650 = vmatprep.subr.mxu0 0.0
    %651 = vmatpush1.msra.mxu0 %v346
    %652 = vmatprep.subr.mxu0 0.0
    %653 = vmatpush1.msra.mxu0 %v349
    %654 = vmatprep.subr.mxu0 0.0
    %655 = vmatpush1.msra.mxu0 %v352
    %656 = vmatprep.subr.mxu0 0.0
    %657 = vmatpush1.msra.mxu0 %v355
    %658 = vmatprep.subr.mxu0 0.0
    %659 = vmatpush1.msra.mxu0 %v358
    %660 = vmatprep.subr.mxu0 0.0
    %661 = vmatpush1.msra.mxu0 %v361
    %662 = vmatprep.subr.mxu0 0.0
    %663 = vmatpush1.msra.mxu0 %v364
    %664 = vmatprep.subr.mxu0 0.0
    %665 = vmatpush1.msra.mxu0 %v367
    %666 = vmatprep.subr.mxu0 0.0
    %667 = vmatpush1.msra.mxu0 %v370
    %668 = vmatprep.subr.mxu0 0.0
    %669 = vmatpush1.msra.mxu0 %v373
    %670 = vmatprep.subr.mxu0 0.0
    %671 = vmatpush1.msra.mxu0 %v376
    %672 = vmatprep.subr.mxu0 0.0
    %673 = vmatpush1.msra.mxu0 %v379
    %674 = vmatprep.subr.mxu0 0.0
    %675 = vmatpush1.msra.mxu0 %v382
    %676 = vmatprep.subr.mxu0 0.0
    %677 = vmatpush1.msra.mxu0 %v385
    %678 = vmatprep.subr.mxu0 0.0
    %679 = vmatpush1.msra.mxu0 %v388
    %680 = vmatprep.subr.mxu0 0.0
    %681 = vmatpush1.msra.mxu0 %v391
    %682 = vmatprep.subr.mxu0 0.0
    %683 = vmatpush1.msra.mxu0 %v394
    %684 = vmatprep.subr.mxu0 0.0
    %685 = vmatpush1.msra.mxu0 %v397
    %686 = vmatprep.subr.mxu0 0.0
    %687 = vmatpush1.msra.mxu0 %v400
    %688 = vmatprep.subr.mxu0 0.0
    %689 = vmatpush1.msra.mxu0 %v403
    %690 = vmatprep.subr.mxu0 0.0
    %691 = vmatpush1.msra.mxu0 %v406
    %692 = vmatprep.subr.mxu0 0.0
    %693 = vmatpush1.msra.mxu0 %v409
    %694 = vmatprep.subr.mxu0 0.0
    %695 = vmatpush1.msra.mxu0 %v412
    %696 = vmatprep.subr.mxu0 0.0
    %697 = vmatpush1.msra.mxu0 %v415
    %698 = vmatprep.subr.mxu0 0.0
    %699 = vmatpush1.msra.mxu0 %v418
    %700 = vmatprep.subr.mxu0 0.0
    %701 = vmatpush1.msra.mxu0 %v421
    %702 = vmatprep.mubr.f32.mxu0 %v223
    %703 = vmatmul.mubr.f32.gmra.mrb[0].mxu0 %v222
    %v704 = vpop.f32.mrb[0].mxu0
    %v705 = vadd.f32 %v489, %v704
    %v706 = vpop.f32.mrb[0].mxu0
    %707 = vdwg.mxu0
    %708 = vmatprep.subr.mxu0 0.0
    %709 = vmatpush1.msra.mxu0 %v424
    %710 = vmatprep.subr.mxu0 0.0
    %711 = vmatpush1.msra.mxu0 %v427
    %712 = vmatprep.subr.mxu0 0.0
    %713 = vmatpush1.msra.mxu0 %v430
    %714 = vmatprep.subr.mxu0 0.0
    %715 = vmatpush1.msra.mxu0 %v433
    %716 = vmatprep.subr.mxu0 0.0
    %717 = vmatpush1.msra.mxu0 %v436
    %718 = vmatprep.subr.mxu0 0.0
    %719 = vmatpush1.msra.mxu0 %v439
    %720 = vmatprep.subr.mxu0 0.0
    %721 = vmatpush1.msra.mxu0 %v442
    %722 = vmatprep.subr.mxu0 0.0
    %723 = vmatpush1.msra.mxu0 %v445
    %724 = vmatprep.subr.mxu0 0.0
    %725 = vmatpush1.msra.mxu0 %v448
    %726 = vmatprep.subr.mxu0 0.0
    %727 = vmatpush1.msra.mxu0 %v451
    %728 = vmatprep.subr.mxu0 0.0
    %729 = vmatpush1.msra.mxu0 %v454
    %730 = vmatprep.subr.mxu0 0.0
    %731 = vmatpush1.msra.mxu0 %v457
    %732 = vmatprep.subr.mxu0 0.0
    %733 = vmatpush1.msra.mxu0 %v460
    %734 = vmatprep.subr.mxu0 0.0
    %735 = vmatpush1.msra.mxu0 %v463
    %736 = vmatprep.subr.mxu0 0.0
    %737 = vmatpush1.msra.mxu0 %v466
    %738 = vmatprep.subr.mxu0 0.0
    %739 = vmatpush1.msra.mxu0 %v469
    %740 = vmatprep.subr.mxu0 0.0
    %741 = vmatpush1.msra.mxu0 %v472
    %742 = vmatprep.subr.mxu0 0.0
    %743 = vmatpush1.msra.mxu0 %v475
    %744 = vmatprep.subr.mxu0 0.0
    %745 = vmatpush1.msra.mxu0 0.0
    %746 = vmatprep.subr.mxu0 0.0
    %747 = vmatpush1.msra.mxu0 0.0
    %748 = vmatprep.subr.mxu0 0.0
    %749 = vmatpush1.msra.mxu0 0.0
    %750 = vmatprep.subr.mxu0 0.0
    %751 = vmatpush1.msra.mxu0 0.0
    %752 = vmatprep.subr.mxu0 0.0
    %753 = vmatpush1.msra.mxu0 0.0
    %754 = vmatprep.subr.mxu0 0.0
    %755 = vmatpush1.msra.mxu0 0.0
    %756 = vmatprep.subr.mxu0 0.0
    %757 = vmatpush1.msra.mxu0 0.0
    %758 = vmatprep.subr.mxu0 0.0
    %759 = vmatpush1.msra.mxu0 0.0
    %760 = vmatprep.subr.mxu0 0.0
    %761 = vmatpush1.msra.mxu0 0.0
    %762 = vmatprep.subr.mxu0 0.0
    %763 = vmatpush1.msra.mxu0 0.0
    %764 = vmatprep.subr.mxu0 0.0
    %765 = vmatpush1.msra.mxu0 0.0
    %766 = vmatprep.subr.mxu0 0.0
    %767 = vmatpush1.msra.mxu0 0.0
    %768 = vmatprep.subr.mxu0 0.0
    %769 = vmatpush1.msra.mxu0 0.0
    %770 = vmatprep.subr.mxu0 0.0
    %771 = vmatpush1.msra.mxu0 0.0
    %772 = vmatprep.mubr.f32.mxu0 %v494
    %773 = vmatmul.mubr.f32.gmra.mrb[0].mxu0 %v224
    %v774 = vpop.f32.mrb[0].mxu0
    %v775 = vadd.f32 %v705, %v774
    %v776 = vpop.f32.mrb[0].mxu0
    %777 = vdwg.mxu0
    %v778 = vmax.f32 %v634, 0.0
    %v779 = vmax.f32 %v636, 0.0
    %v780 = vmax.f32 %v775, 0.0
    %v781 = vld [vmem:[%s5] sm:$0xf]
    %v782 = vld [vmem:[%s5 + $0x4] sm:$0xf]
    %v783 = vld [vmem:[%s5 + $0x8] sm:$0xf]
    %v784 = vld [vmem:[%s5 + $0xc] sm:$0xf]
    %v785 = vld [vmem:[%s5 + $0x10] sm:$0xf]
    %v786 = vld [vmem:[%s5 + $0x14] sm:$0xf]
    %v787 = vld [vmem:[%s5 + $0x18] sm:$0xf]
    %v788 = vld [vmem:[%s5 + $0x1c] sm:$0xf]
    %v789 = vld [vmem:[%s5 + $0x20] sm:$0xf]
    %v790 = vld [vmem:[%s5 + $0x24] sm:$0xf]
    %v791 = vld [vmem:[%s5 + $0x28] sm:$0xf]
    %v792 = vld [vmem:[%s5 + $0x2c] sm:$0xf]
    %v793 = vld [vmem:[%s5 + $0x30] sm:$0xf]
    %v794 = vld [vmem:[%s5 + $0x34] sm:$0xf]
    %v795 = vld [vmem:[%s5 + $0x38] sm:$0xf]
    %v796 = vld [vmem:[%s5 + $0x3c] sm:$0xf]
    %v797 = vld [vmem:[%s5 + $0x40] sm:$0xf]
    %v798 = vld [vmem:[%s5 + $0x44] sm:$0xf]
    %v799 = vld [vmem:[%s5 + $0x48] sm:$0xf]
    %v800 = vld [vmem:[%s5 + $0x4c] sm:$0xf]
    %v801 = vld [vmem:[%s5 + $0x50] sm:$0xf]
    %v802 = vld [vmem:[%s5 + $0x54] sm:$0xf]
    %v803 = vld [vmem:[%s5 + $0x58] sm:$0xf]
    %v804 = vld [vmem:[%s5 + $0x5c] sm:$0xf]
    %v805 = vld [vmem:[%s5 + $0x60] sm:$0xf]
    %v806 = vld [vmem:[%s5 + $0x64] sm:$0xf]
    %v807 = vld [vmem:[%s5 + $0x68] sm:$0xf]
    %v808 = vld [vmem:[%s5 + $0x6c] sm:$0xf]
    %v809 = vld [vmem:[%s5 + $0x70] sm:$0xf]
    %v810 = vld [vmem:[%s5 + $0x74] sm:$0xf]
    %v811 = vld [vmem:[%s5 + $0x78] sm:$0xf]
    %v812 = vld [vmem:[%s5 + $0x7c] sm:$0xf]
    %v813 = vld [vmem:[%s5 + $0x80] sm:$0xf]
    %v814 = vld [vmem:[%s5 + $0x84] sm:$0xf]
    %v815 = vld [vmem:[%s5 + $0x88] sm:$0xf]
    %v816 = vld [vmem:[%s5 + $0x8c] sm:$0xf]
    %v817 = vld [vmem:[%s5 + $0x90] sm:$0xf]
    %v818 = vld [vmem:[%s5 + $0x94] sm:$0x3]
    %v819 = vunpack.c.l.bf16 %v781
    %v820 = vunpack.c.l.bf16 %v782
    %v821 = vunpack.c.l.bf16 %v783
    %v822 = vunpack.c.l.bf16 %v784
    %v823 = vunpack.c.l.bf16 %v785
    %v824 = vunpack.c.l.bf16 %v786
    %v825 = vunpack.c.l.bf16 %v787
    %v826 = vunpack.c.l.bf16 %v788
    %v827 = vunpack.c.l.bf16 %v789
    %v828 = vunpack.c.l.bf16 %v790
    %v829 = vunpack.c.l.bf16 %v791
    %v830 = vunpack.c.l.bf16 %v792
    %v831 = vunpack.c.l.bf16 %v793
    %v832 = vunpack.c.l.bf16 %v794
    %v833 = vunpack.c.l.bf16 %v795
    %v834 = vunpack.c.l.bf16 %v796
    %v835 = vunpack.c.l.bf16 %v797
    %v836 = vunpack.c.l.bf16 %v798
    %v837 = vunpack.c.l.bf16 %v799
    %v838 = vunpack.c.l.bf16 %v800
    %v839 = vunpack.c.l.bf16 %v801
    %v840 = vunpack.c.l.bf16 %v802
    %v841 = vunpack.c.l.bf16 %v803
    %v842 = vunpack.c.l.bf16 %v804
    %v843 = vunpack.c.l.bf16 %v805
    %v844 = vunpack.c.l.bf16 %v806
    %v845 = vunpack.c.l.bf16 %v807
    %v846 = vunpack.c.l.bf16 %v808
    %v847 = vunpack.c.l.bf16 %v809
    %v848 = vunpack.c.l.bf16 %v810
    %v849 = vunpack.c.l.bf16 %v811
    %v850 = vunpack.c.l.bf16 %v812
    %v851 = vunpack.c.l.bf16 %v813
    %v852 = vunpack.c.l.bf16 %v814
    %v853 = vunpack.c.l.bf16 %v815
    %v854 = vunpack.c.l.bf16 %v816
    %v855 = vunpack.c.l.bf16 %v817
    %v856 = vunpack.c.l.bf16 %v818
    %v857 = vld [vmem:[%s6] sm:$0x1]
    %v859 = vlaneseq
    %v860 = vshrl.u32 %v859, 7
    %v861 = vsub.s32 0, %v860
    %v862 = vrot.slane %v857, %v861
    %vm864 = vcmask 359424
    %v866 = vsel %vm864, %v780, 0
    %vm868 = vcmask 1043456
    %v870 = vsel %vm868, %v856, 0
    %872 = vmatprep.subr.mxu0 0.0
    %873 = vmatpush1.msra.mxu0 %v819
    %874 = vmatprep.subr.mxu0 0.0
    %875 = vmatpush1.msra.mxu0 %v820
    %876 = vmatprep.subr.mxu0 0.0
    %877 = vmatpush1.msra.mxu0 %v821
    %878 = vmatprep.subr.mxu0 0.0
    %879 = vmatpush1.msra.mxu0 %v822
    %880 = vmatprep.subr.mxu0 0.0
    %881 = vmatpush1.msra.mxu0 %v823
    %882 = vmatprep.subr.mxu0 0.0
    %883 = vmatpush1.msra.mxu0 %v824
    %884 = vmatprep.subr.mxu0 0.0
    %885 = vmatpush1.msra.mxu0 %v825
    %886 = vmatprep.subr.mxu0 0.0
    %887 = vmatpush1.msra.mxu0 %v826
    %888 = vmatprep.subr.mxu0 0.0
    %889 = vmatpush1.msra.mxu0 %v827
    %890 = vmatprep.subr.mxu0 0.0
    %891 = vmatpush1.msra.mxu0 %v828
    %892 = vmatprep.subr.mxu0 0.0
    %893 = vmatpush1.msra.mxu0 %v829
    %894 = vmatprep.subr.mxu0 0.0
    %895 = vmatpush1.msra.mxu0 %v830
    %896 = vmatprep.subr.mxu0 0.0
    %897 = vmatpush1.msra.mxu0 %v831
    %898 = vmatprep.subr.mxu0 0.0
    %899 = vmatpush1.msra.mxu0 %v832
    %900 = vmatprep.subr.mxu0 0.0
    %901 = vmatpush1.msra.mxu0 %v833
    %902 = vmatprep.subr.mxu0 0.0
    %903 = vmatpush1.msra.mxu0 %v834
    %904 = vmatprep.subr.mxu0 0.0
    %905 = vmatpush1.msra.mxu0 %v835
    %906 = vmatprep.subr.mxu0 0.0
    %907 = vmatpush1.msra.mxu0 %v836
    %908 = vmatprep.subr.mxu0 0.0
    %909 = vmatpush1.msra.mxu0 %v837
    %910 = vmatprep.subr.mxu0 0.0
    %911 = vmatpush1.msra.mxu0 %v838
    %912 = vmatprep.subr.mxu0 0.0
    %913 = vmatpush1.msra.mxu0 %v839
    %914 = vmatprep.subr.mxu0 0.0
    %915 = vmatpush1.msra.mxu0 %v840
    %916 = vmatprep.subr.mxu0 0.0
    %917 = vmatpush1.msra.mxu0 %v841
    %918 = vmatprep.subr.mxu0 0.0
    %919 = vmatpush1.msra.mxu0 %v842
    %920 = vmatprep.subr.mxu0 0.0
    %921 = vmatpush1.msra.mxu0 %v843
    %922 = vmatprep.subr.mxu0 0.0
    %923 = vmatpush1.msra.mxu0 %v844
    %924 = vmatprep.subr.mxu0 0.0
    %925 = vmatpush1.msra.mxu0 %v845
    %926 = vmatprep.subr.mxu0 0.0
    %927 = vmatpush1.msra.mxu0 %v846
    %928 = vmatprep.subr.mxu0 0.0
    %929 = vmatpush1.msra.mxu0 %v847
    %930 = vmatprep.subr.mxu0 0.0
    %931 = vmatpush1.msra.mxu0 %v848
    %932 = vmatprep.subr.mxu0 0.0
    %933 = vmatpush1.msra.mxu0 %v849
    %934 = vmatprep.subr.mxu0 0.0
    %935 = vmatpush1.msra.mxu0 %v850
    %936 = vmatprep.mubr.f32.mxu0 %v779
    %937 = vmatmul.mubr.f32.gmra.mrb[0].mxu0 %v778
    %v938 = vpop.f32.mrb[0].mxu0
    %v939 = vadd.f32 %v862, %v938
    %v940 = vpop.f32.mrb[0].mxu0
    %941 = vdwg.mxu0
    %942 = vmatprep.subr.mxu0 0.0
    %943 = vmatpush1.msra.mxu0 %v851
    %944 = vmatprep.subr.mxu0 0.0
    %945 = vmatpush1.msra.mxu0 %v852
    %946 = vmatprep.subr.mxu0 0.0
    %947 = vmatpush1.msra.mxu0 %v853
    %948 = vmatprep.subr.mxu0 0.0
    %949 = vmatpush1.msra.mxu0 %v854
    %950 = vmatprep.subr.mxu0 0.0
    %951 = vmatpush1.msra.mxu0 %v855
    %952 = vmatprep.subr.mxu0 0.0
    %953 = vmatpush1.msra.mxu0 %v870
    %954 = vmatprep.subr.mxu0 0.0
    %955 = vmatpush1.msra.mxu0 0.0
    %956 = vmatprep.subr.mxu0 0.0
    %957 = vmatpush1.msra.mxu0 0.0
    %958 = vmatprep.subr.mxu0 0.0
    %959 = vmatpush1.msra.mxu0 0.0
    %960 = vmatprep.subr.mxu0 0.0
    %961 = vmatpush1.msra.mxu0 0.0
    %962 = vmatprep.subr.mxu0 0.0
    %963 = vmatpush1.msra.mxu0 0.0
    %964 = vmatprep.subr.mxu0 0.0
    %965 = vmatpush1.msra.mxu0 0.0
    %966 = vmatprep.subr.mxu0 0.0
    %967 = vmatpush1.msra.mxu0 0.0
    %968 = vmatprep.subr.mxu0 0.0
    %969 = vmatpush1.msra.mxu0 0.0
    %970 = vmatprep.subr.mxu0 0.0
    %971 = vmatpush1.msra.mxu0 0.0
    %972 = vmatprep.subr.mxu0 0.0
    %973 = vmatpush1.msra.mxu0 0.0
    %974 = vmatprep.subr.mxu0 0.0
    %975 = vmatpush1.msra.mxu0 0.0
    %976 = vmatprep.subr.mxu0 0.0
    %977 = vmatpush1.msra.mxu0 0.0
    %978 = vmatprep.subr.mxu0 0.0
    %979 = vmatpush1.msra.mxu0 0.0
    %980 = vmatprep.subr.mxu0 0.0
    %981 = vmatpush1.msra.mxu0 0.0
    %982 = vmatprep.subr.mxu0 0.0
    %983 = vmatpush1.msra.mxu0 0.0
    %984 = vmatprep.subr.mxu0 0.0
    %985 = vmatpush1.msra.mxu0 0.0
    %986 = vmatprep.subr.mxu0 0.0
    %987 = vmatpush1.msra.mxu0 0.0
    %988 = vmatprep.subr.mxu0 0.0
    %989 = vmatpush1.msra.mxu0 0.0
    %990 = vmatprep.subr.mxu0 0.0
    %991 = vmatpush1.msra.mxu0 0.0
    %992 = vmatprep.subr.mxu0 0.0
    %993 = vmatpush1.msra.mxu0 0.0
    %994 = vmatprep.subr.mxu0 0.0
    %995 = vmatpush1.msra.mxu0 0.0
    %996 = vmatprep.subr.mxu0 0.0
    %997 = vmatpush1.msra.mxu0 0.0
    %998 = vmatprep.subr.mxu0 0.0
    %999 = vmatpush1.msra.mxu0 0.0
    %1000 = vmatprep.subr.mxu0 0.0
    %1001 = vmatpush1.msra.mxu0 0.0
    %1002 = vmatprep.subr.mxu0 0.0
    %1003 = vmatpush1.msra.mxu0 0.0
    %1004 = vmatprep.subr.mxu0 0.0
    %1005 = vmatpush1.msra.mxu0 0.0
    %1006 = vmatprep.mubr.f32.mxu0 0.0
    %1007 = vmatmul.mubr.f32.gmra.mrb[0].mxu0 %v866
    %v1008 = vpop.f32.mrb[0].mxu0
    %v1009 = vadd.f32 %v939, %v1008
    %v1010 = vpop.f32.mrb[0].mxu0
    %1011 = vdwg.mxu0
    %v1012 = vtanh.pop %v1009
    %v1013 = vmul.f32 %v1012, 3.0
    %vm1014 = vcmask 64512
    %1015 = vst.msk [vmem:[#allocation5] sm:$0xff] %vm1014, %v1013
    // Predicated region
    $region34: #{tpu_custom_call.1} parent=1 // pred_check
      _
    $region35: #{tpu_custom_call.1} parent=1 // pred_check_branch
      %1017 = sbr.rel (0) target = $region37
    $region36: #{tpu_custom_call.1} parent=1 // pred_region
      %s1019 = ssub.s32 128, 128
      %1020 = vsyncadd [#allocation4], %s1019
      %s1022 = sshll.u32 [#allocation5], 4
      %s1023 = int_to_ptr.vmem [resolvable:$true] %s1022
      %1025 = dma.vmem_to_hbm [thread:$0]  %s1023, 128, %s7, [#allocation4]
    $region37: #{tpu_custom_call.1} parent=1 // pred_fallthru
      _
    // Predicated region
    $region38: #{tpu_custom_call.1} parent=1 // pred_check
      _
    $region39: #{tpu_custom_call.1} parent=1 // pred_check_branch
      %1027 = sbr.rel (0) target = $region41
    $region40: #{tpu_custom_call.1} parent=1 // pred_region
      %1028 = dma.done [#allocation4], 128
    $region41: #{tpu_custom_call.1} parent=1 // pred_fallthru
      _
    %1029 = vsyncpa [#allocation3], 1
    %1030 = vsyncpa [#allocation4], 1

</llo_original>
